<compile_context>
chip_gen: v6e
topology: v6e:2x2x1
jax: 0.10.0
libtpu: 0.0.40
codegen_flags: <defaults>
</compile_context>

<pallas_src>
import functools
import itertools

import numpy as np
import jax
import jax.numpy as jnp
from jax.experimental import pallas as pl
from jax.experimental.pallas import tpu as pltpu

INFTY_COST = 100000.0

# Matcher weights (config.MODEL.MATCHER.C_NODE / C_CLASS) — deterministic.
C_NODE = 5.0
C_CLASS = 3.0


def _round_up(x, m):
    return ((x + m - 1) // m) * m


# ----------------------------- Pallas kernel --------------------------------
def _matcher_cost_kernel(feat_ref, tgt_t_ref, c_ref, *, c_node, c_class, k):
    feat = feat_ref[...]            # [TILE_N, 2+K]  packed: x, y, logits...
    tgt_t = tgt_t_ref[...]          # [2, T_pad]     (resident across the grid)

    x_o = feat[:, 0:1]              # [TILE_N, 1]
    y_o = feat[:, 1:2]              # [TILE_N, 1]
    logits = feat[:, 2:2 + k]       # [TILE_N, K]

    x_t = tgt_t[0:1, :]             # [1, T_pad]
    y_t = tgt_t[1:2, :]             # [1, T_pad]

    # ---- L1 cdist (pairwise Manhattan distance) -> [TILE_N, T_pad] ----
    cost_nodes = jnp.abs(x_o - x_t) + jnp.abs(y_o - y_t)

    # ---- classification cost: -softmax(logits)[:, 1] ----
    # tgt_ids is [1]*T by construction in the reference module, so the gather
    # reduces to the class-1 probability, constant across target columns.
    # TODO(synk): if target class ids can ever differ from 1, pass tgt_ids via
    # scalar prefetch and gather the matching softmax columns instead.
    m = jnp.max(logits, axis=-1, keepdims=True)
    e = jnp.exp(logits - m)                          # EUP
    s = jnp.sum(e, axis=-1, keepdims=True)
    cost_class = -(e[:, 1:2] / s)                    # [TILE_N, 1]; 1 div per row

    # Hoist the class weight onto the [TILE_N, 1] column before broadcasting.
    cc = c_class * cost_class
    c_ref[...] = c_node * cost_nodes + cc            # lane-dense store


def compute_cost_matrix(pred_nodes, pred_logits, tgt_nodes_concat,
                        c_node=C_NODE, c_class=C_CLASS, tile_n=1024):
    """Returns C with shape [bs, num_queries, total_targets] (float32)."""
    bs, nq = pred_nodes.shape[:2]
    K = pred_logits.shape[-1]
    N = bs * nq
    T = int(tgt_nodes_concat.shape[0])

    if T == 0:  # degenerate: no targets at all
        return jnp.zeros((bs, nq, 0), jnp.float32)

    # ---- pack per-row side inputs into one lane-packed array [N, 2+K] ----
    out_nodes = pred_nodes[..., :2].reshape(N, 2).astype(jnp.float32)
    logits = pred_logits.reshape(N, K).astype(jnp.float32)
    row_feat = jnp.concatenate([out_nodes, logits], axis=1)          # [N, 2+K]
    F = 2 + K

    # ---- targets pre-transposed, T padded to a lane-dense multiple of 128 ---
    T_pad = max(128, _round_up(T, 128))
    tgt_t = jnp.transpose(tgt_nodes_concat.astype(jnp.float32))      # [2, T]
    tgt_t = jnp.pad(tgt_t, ((0, 0), (0, T_pad - T)))                 # [2, T_pad]

    # ---- choose TILE_N: multiple of 8, sized so the double-buffered output
    #      tile (the dominant VMEM consumer) stays under ~12 MiB, which is
    #      safe against every generation's scoped-VMEM default.
    vmem_budget = 12 * 1024 * 1024
    max_tile_n = max(8, (vmem_budget // (2 * 4 * T_pad)) // 8 * 8)
    tile_n = max(8, min(tile_n, max_tile_n, _round_up(N, 8)))

    grid_n = pl.cdiv(N, tile_n)
    N_pad = grid_n * tile_n
    if N_pad != N:
        row_feat = jnp.pad(row_feat, ((0, N_pad - N), (0, 0)))

    kernel = functools.partial(_matcher_cost_kernel,
                               c_node=float(c_node), c_class=float(c_class), k=K)

    C = pl.pallas_call(
        kernel,
        out_shape=jax.ShapeDtypeStruct((N_pad, T_pad), jnp.float32),
        grid=(grid_n,),
        in_specs=[
            pl.BlockSpec((tile_n, F), lambda i: (i, 0)),     # packed row features
            pl.BlockSpec((2, T_pad), lambda i: (0, 0)),      # targets, resident
        ],
        out_specs=pl.BlockSpec((tile_n, T_pad), lambda i: (i, 0)),
        compiler_params=pltpu.CompilerParams(
            dimension_semantics=("parallel",),               # shard N over TCs (v7x)
            vmem_limit_bytes=32 * 1024 * 1024,
        ),
    )(row_feat, tgt_t)

    return C[:N, :T].reshape(bs, nq, T)


# --------------------- host-side Hungarian assignment -----------------------
# TODO(synk): the Hungarian algorithm (scipy.linear_sum_assignment) is a
# sequential, data-dependent host algorithm with no clean Pallas equivalent;
# it stays on the host exactly as in the reference module.
def _lsa_bruteforce(cost):
    cost = np.asarray(cost)
    n_rows, n_cols = cost.shape
    transposed = False
    if n_rows < n_cols:
        cost = cost.T
        n_rows, n_cols = cost.shape
        transposed = True
    best_perm, best_val = None, np.inf
    for perm in itertools.permutations(range(n_rows), n_cols):
        val = sum(cost[perm[j], j] for j in range(n_cols))
        if val < best_val:
            best_val, best_perm = val, perm
    rows = np.asarray(best_perm, dtype=np.int64)
    cols = np.arange(n_cols, dtype=np.int64)
    if transposed:
        rows, cols = cols, rows
    order = np.argsort(rows)
    return rows[order], cols[order]


try:
    from scipy.optimize import linear_sum_assignment
except ImportError:  # small shapes -> exact brute-force fallback
    linear_sum_assignment = _lsa_bruteforce


def linear_sum_assignment_with_inf(cost_matrix):
    cost_matrix = np.asarray(cost_matrix).copy()
    if np.isnan(cost_matrix).any():
        cost_matrix[np.isnan(cost_matrix)] = INFTY_COST
    return linear_sum_assignment(cost_matrix)


def hungarian_matcher(outputs, targets, c_node=C_NODE, c_class=C_CLASS):
    """JAX/Pallas port of HungarianMatcher.forward.

    outputs: dict with 'pred_nodes' [bs, nq, D>=2], 'pred_logits' [bs, nq, K]
    targets: dict with 'nodes' = list of [n_i, 2] arrays
    Returns (indices, C) where indices is a list of (row_idx, col_idx) int64
    numpy arrays, one per batch item.
    """
    sizes = [int(np.asarray(v).shape[0]) for v in targets['nodes']]
    total = sum(sizes)
    if total > 0:
        tgt_nodes_concat = jnp.concatenate(
            [jnp.asarray(v, dtype=jnp.float32).reshape(-1, 2) for v in targets['nodes']], axis=0)
    else:
        tgt_nodes_concat = jnp.zeros((0, 2), jnp.float32)

    C = compute_cost_matrix(outputs['pred_nodes'], outputs['pred_logits'],
                            tgt_nodes_concat, c_node, c_class)
    C = np.asarray(jax.block_until_ready(C))  # [bs, nq, T]

    indices = []
    offset = 0
    for i, sz in enumerate(sizes):
        if sz == 0:
            indices.append((np.zeros((0,), np.int64), np.zeros((0,), np.int64)))
            continue
        c_i = C[i, :, offset:offset + sz]
        r, c = linear_sum_assignment_with_inf(c_i)
        indices.append((np.asarray(r, dtype=np.int64), np.asarray(c, dtype=np.int64)))
        offset += sz
    return indices, C


# --------------------------------- main --------------------------------------
if __name__ == "__main__":
    key = jax.random.PRNGKey(0)
    bs, nq, D, K = 2, 8, 4, 2
    k1, k2, k3, k4 = jax.random.split(key, 4)

    pred_nodes = jax.random.uniform(k1, (bs, nq, D), dtype=jnp.float32)
    pred_logits = jax.random.normal(k2, (bs, nq, K), dtype=jnp.float32)
    tgt0 = jax.random.uniform(k3, (3, 2), dtype=jnp.float32)
    tgt1 = jax.random.uniform(k4, (4, 2), dtype=jnp.float32)

    outputs = {'pred_nodes': pred_nodes, 'pred_logits': pred_logits}
    targets = {'nodes': [tgt0, tgt1]}

    indices, C = hungarian_matcher(outputs, targets)

    # ---- reference check of the Pallas-computed cost matrix (pure numpy) ----
    out_np = np.asarray(pred_nodes)[..., :2].reshape(bs * nq, 2)
    tgt_np = np.concatenate([np.asarray(tgt0), np.asarray(tgt1)], axis=0)
    cost_nodes_ref = np.abs(out_np[:, None, :] - tgt_np[None, :, :]).sum(-1)
    lg = np.asarray(pred_logits).reshape(bs * nq, K)
    p = np.exp(lg - lg.max(-1, keepdims=True))
    p = p / p.sum(-1, keepdims=True)
    cost_class_ref = -p[:, 1:2]  # tgt_ids are all 1
    C_ref = (C_NODE * cost_nodes_ref + C_CLASS * cost_class_ref).reshape(bs, nq, -1)
    assert np.allclose(C, C_ref, rtol=1e-5, atol=1e-5), "cost matrix mismatch"

    for r, c in indices:
        assert r.dtype == np.int64 and c.dtype == np.int64
        assert len(r) == len(c)

    print("KERNEL_OK")
</pallas_src>

<mosaic_0001>
module attributes {stable_mosaic.version = 11 : i64} {
  func.func @_matcher_cost_kernel(%arg0: i32, %arg1: memref<16x4xf32, #tpu.memory_space<vmem>>, %arg2: memref<2x128xf32, #tpu.memory_space<vmem>>, %arg3: memref<16x128xf32, #tpu.memory_space<vmem>>) attributes {dimension_semantics = [#tpu.dimension_semantics<parallel>], iteration_bounds = array<i64: 1>, scalar_prefetch = 0 : i64, scratch_operands = 0 : i64, tpu.core_type = #tpu.core_type<tc>, window_params = [{transform_indices = @transform_0, window_bounds = array<i64: 16, 4>}, {pipeline_mode = #tpu.pipeline_mode<synchronous>, transform_indices = @transform_1, window_bounds = array<i64: 2, 128>}, {transform_indices = @transform_2, window_bounds = array<i64: 16, 128>}]} {
    %c0 = arith.constant 0 : index
    %c0_0 = arith.constant 0 : index
    %0 = vector.load %arg1[%c0, %c0_0] : memref<16x4xf32, #tpu.memory_space<vmem>>, vector<16x4xf32>
    %c0_1 = arith.constant 0 : index
    %c0_2 = arith.constant 0 : index
    %1 = vector.load %arg2[%c0_1, %c0_2] : memref<2x128xf32, #tpu.memory_space<vmem>>, vector<2x128xf32>
    %2 = vector.extract_strided_slice %0 {offsets = [0, 0], sizes = [16, 1], strides = [1, 1]} : vector<16x4xf32> to vector<16x1xf32>
    %3 = vector.extract_strided_slice %0 {offsets = [0, 1], sizes = [16, 1], strides = [1, 1]} : vector<16x4xf32> to vector<16x1xf32>
    %4 = vector.extract_strided_slice %0 {offsets = [0, 2], sizes = [16, 2], strides = [1, 1]} : vector<16x4xf32> to vector<16x2xf32>
    %5 = vector.extract_strided_slice %1 {offsets = [0, 0], sizes = [1, 128], strides = [1, 1]} : vector<2x128xf32> to vector<1x128xf32>
    %6 = vector.extract_strided_slice %1 {offsets = [1, 0], sizes = [1, 128], strides = [1, 1]} : vector<2x128xf32> to vector<1x128xf32>
    %7 = vector.broadcast %2 : vector<16x1xf32> to vector<16x128xf32>
    %8 = vector.broadcast %5 : vector<1x128xf32> to vector<16x128xf32>
    %9 = arith.subf %7, %8 : vector<16x128xf32>
    %10 = math.absf %9 : vector<16x128xf32>
    %11 = vector.broadcast %3 : vector<16x1xf32> to vector<16x128xf32>
    %12 = vector.broadcast %6 : vector<1x128xf32> to vector<16x128xf32>
    %13 = arith.subf %11, %12 : vector<16x128xf32>
    %14 = math.absf %13 : vector<16x128xf32>
    %15 = arith.addf %10, %14 : vector<16x128xf32>
    %cst = arith.constant dense<0xFF800000> : vector<16xf32>
    %16 = vector.multi_reduction <maximumf>, %4, %cst [1] : vector<16x2xf32> to vector<16xf32>
    %17 = vector.shape_cast %16 : vector<16xf32> to vector<16x1xf32>
    %18 = vector.broadcast %17 : vector<16x1xf32> to vector<16x2xf32>
    %19 = arith.subf %4, %18 : vector<16x2xf32>
    %20 = math.exp %19 : vector<16x2xf32>
    %cst_3 = arith.constant dense<0.000000e+00> : vector<16xf32>
    %21 = vector.multi_reduction <add>, %20, %cst_3 [1] : vector<16x2xf32> to vector<16xf32>
    %22 = vector.shape_cast %21 : vector<16xf32> to vector<16x1xf32>
    %23 = vector.extract_strided_slice %20 {offsets = [0, 1], sizes = [16, 1], strides = [1, 1]} : vector<16x2xf32> to vector<16x1xf32>
    %24 = arith.divf %23, %22 : vector<16x1xf32>
    %cst_4 = arith.constant 0.000000e+00 : f32
    %25 = vector.broadcast %cst_4 : f32 to vector<16x1xf32>
    %26 = arith.subf %25, %24 : vector<16x1xf32>
    %cst_5 = arith.constant 3.000000e+00 : f32
    %27 = vector.broadcast %cst_5 : f32 to vector<16x1xf32>
    %28 = arith.mulf %27, %26 : vector<16x1xf32>
    %cst_6 = arith.constant 5.000000e+00 : f32
    %29 = vector.broadcast %cst_6 : f32 to vector<16x128xf32>
    %30 = arith.mulf %29, %15 : vector<16x128xf32>
    %31 = vector.broadcast %28 : vector<16x1xf32> to vector<16x128xf32>
    %32 = arith.addf %30, %31 : vector<16x128xf32>
    %c0_7 = arith.constant 0 : index
    %c0_8 = arith.constant 0 : index
    %33 = vector.load %arg3[%c0_7, %c0_8] : memref<16x128xf32, #tpu.memory_space<vmem>>, vector<16x128xf32>
    tpu.vector_store %arg3[%c0_7, %c0_8], %32 {strides = array<i32>} : memref<16x128xf32, #tpu.memory_space<vmem>>, vector<16x128xf32>,
    return
  }
  func.func @transform_0(%arg0: i32) -> (i32, i32) {
    %c0_i32 = arith.constant 0 : i32
    %c0_i32_0 = arith.constant 0 : i32
    return %arg0, %c0_i32 : i32, i32
  }
  func.func @transform_1(%arg0: i32) -> (i32, i32) {
    %c0_i32 = arith.constant 0 : i32
    %c0_i32_0 = arith.constant 0 : i32
    %c0_i32_1 = arith.constant 0 : i32
    return %c0_i32, %c0_i32_0 : i32, i32
  }
  func.func @transform_2(%arg0: i32) -> (i32, i32) {
    %c0_i32 = arith.constant 0 : i32
    %c0_i32_0 = arith.constant 0 : i32
    return %arg0, %c0_i32 : i32, i32
  }
}

</mosaic_0001>

<llo_original>
// kernel: tpu_custom_call.1
$region0: #{tpu_custom_call.1}
  #allocation0 [shape = 'u32[]', space=smem, size = 0x4, offset = 0x4, fixed_abs, tag = 'smem constant byte address 0x4 - core index']
  #allocation1 [shape = 'u32[144,128]{1,0:T(1,128)}', space=vmem, size = 0x12000, scoped, tag = 'internal scratch']
  %s0 = inlined_call_operand.vmem [shape: f32[16,4], index: 0, kind: input, shape index: {}]
  %s1 = inlined_call_operand.vmem [shape: f32[2,128], index: 1, kind: input, shape index: {}]
  %s2 = inlined_call_operand.hbm [shape: f32[16,128], index: 2, kind: output, shape index: {}]
  %s3 = sld [smem:[#allocation0]]
  $region18: #{tpu_custom_call.1} parent=0
    _
  %s5 = ssub.s32 1, %s3
  %s6 = scalar_select 0, %s5, %s3
  $region1: #{tpu_custom_call.1} parent=0
    #allocation2 [shape = 'u8[8192]{0}', space=vmem, size = 0x2000, scoped, tag = 'output window, operand 0, single buffered']
    #allocation3 [shape = 's32[1]{0}', space=sflag, size = 0x4, scoped, tag = 'scoped memory for tpu_custom_call.1']
    %7 = vsyncpa [#allocation3], 0
    // Predicated region
    $region2: #{tpu_custom_call.1} parent=1 // pred_check
      _
    $region3: #{tpu_custom_call.1} parent=1 // pred_check_branch
      %9 = sbr.rel (0) target = $region5
    $region4: #{tpu_custom_call.1} parent=1 // pred_region
      _
    $region5: #{tpu_custom_call.1} parent=1 // pred_fallthru
      _
    // Predicated region
    $region6: #{tpu_custom_call.1} parent=1 // pred_check
      _
    $region7: #{tpu_custom_call.1} parent=1 // pred_check_branch
      %11 = sbr.rel (0) target = $region9
    $region8: #{tpu_custom_call.1} parent=1 // pred_region
      _
    $region9: #{tpu_custom_call.1} parent=1 // pred_fallthru
      _
    %v12 = vld [vmem:[%s0] sm:$0xff]
    %v13 = vld [vmem:[%s0 + $0x8] sm:$0xff]
    %v14 = vld [vmem:[%s1] sm:$0x3]
    %16 = vset.pattern.permute.xlu0 0
    %17 = vperm.xlu0 %16, %v12
    %v18 = vpop.permute.xlu0 %17
    %21 = vset.pattern.permute.xlu0 0
    %22 = vperm.xlu0 %21, %v13
    %v23 = vpop.permute.xlu0 %22
    %v25 = vlaneseq
    %v26 = vshrl.u32 %v25, 7
    %v27 = vsub.s32 0, %v26
    %v28 = vrot.slane %v14, %v27
    %v29 = vsub.f32 %v18, %v28
    %v30 = vsub.f32 %v23, %v28
    %v31 = vand.u32 2147483647, %v29
    %v32 = vand.u32 2147483647, %v30
    %33 = vset.pattern.permute.xlu0 1
    %34 = vperm.xlu0 %33, %v12
    %v35 = vpop.permute.xlu0 %34
    %37 = vset.pattern.permute.xlu0 1
    %38 = vperm.xlu0 %37, %v13
    %v39 = vpop.permute.xlu0 %38
    %v41 = vlaneseq
    %v42 = vshrl.u32 %v41, 7
    %v43 = vsub.s32 1, %v42
    %v44 = vrot.slane %v14, %v43
    %v45 = vsub.f32 %v35, %v44
    %v46 = vsub.f32 %v39, %v44
    %v47 = vand.u32 2147483647, %v45
    %v48 = vand.u32 2147483647, %v46
    %v49 = vadd.f32 %v31, %v47
    %v50 = vadd.f32 %v32, %v48
    %vm51 = vcmask 31760
    %v52 = vsel %vm51, %v12, -inf
    %53 = vmax.xlane.f32.xlu0 %v52
    %v54 = vpop.xlane.xlu0 %53
    %v55 = vsel %vm51, %v13, -inf
    %56 = vmax.xlane.f32.xlu0 %v55
    %v57 = vpop.xlane.xlu0 %56
    %v58 = vsub.f32 %v12, %v54
    %v59 = vsub.f32 %v13, %v57
    %v60 = vmul.f32 %v58, 1.442695
    %v61 = vpow.pop %v60
    %v62 = vmul.f32 %v59, 1.442695
    %v63 = vpow.pop %v62
    %66 = vrot.lane.b32.xlu0 %v61, 126
    %v67 = vpop.permute.xlu0 %66
    %68 = vrot.lane.b32.xlu0 %v63, 126
    %v69 = vpop.permute.xlu0 %68
    %vm72 = vcmask 15360
    %v73 = vsel %vm72, %v67, 0.0
    %74 = vadd.xlane.f32.xlu0 %v73
    %v75 = vpop.xlane.xlu0 %74
    %v76 = vsel %vm72, %v69, 0.0
    %77 = vadd.xlane.f32.xlu0 %v76
    %v78 = vpop.xlane.xlu0 %77
    %v79 = vrcp.pop %v75
    %v80 = vmul.f32 %v61, %v79
    %v81 = vrcp.pop %v78
    %v82 = vmul.f32 %v63, %v81
    %v83 = vsub.f32 0.0, %v80
    %v84 = vsub.f32 0.0, %v82
    %v85 = vmul.f32 %v83, 3.0
    %v86 = vmul.f32 %v84, 3.0
    %v87 = vmul.f32 %v49, 5.0
    %v88 = vmul.f32 %v50, 5.0
    %90 = vset.pattern.permute.xlu0 3
    %91 = vperm.xlu0 %90, %v85
    %v92 = vpop.permute.xlu0 %91
    %95 = vset.pattern.permute.xlu0 3
    %96 = vperm.xlu0 %95, %v86
    %v97 = vpop.permute.xlu0 %96
    %v99 = vadd.f32 %v87, %v92
    %v100 = vadd.f32 %v88, %v97
    %101 = vst [vmem:[#allocation2] sm:$0xff] %v99
    %102 = vst [vmem:[#allocation2 + $0x8] sm:$0xff] %v100
    // Predicated region
    $region10: #{tpu_custom_call.1} parent=1 // pred_check
      _
    $region11: #{tpu_custom_call.1} parent=1 // pred_check_branch
      %104 = sbr.rel (0) target = $region13
    $region12: #{tpu_custom_call.1} parent=1 // pred_region
      %s106 = ssub.s32 256, 256
      %107 = vsyncadd [#allocation3], %s106
      %s108 = sshll.u32 [#allocation2], 4
      %s109 = int_to_ptr.vmem [resolvable:$true] %s108
      %114 = dma.vmem_to_hbm [thread:$0]  %s109, 256, %s2, [#allocation3], 128, 128, 8
    $region13: #{tpu_custom_call.1} parent=1 // pred_fallthru
      _
    // Predicated region
    $region14: #{tpu_custom_call.1} parent=1 // pred_check
      _
    $region15: #{tpu_custom_call.1} parent=1 // pred_check_branch
      %116 = sbr.rel (0) target = $region17
    $region16: #{tpu_custom_call.1} parent=1 // pred_region
      %117 = dma.done [#allocation3], 256
    $region17: #{tpu_custom_call.1} parent=1 // pred_fallthru
      _
    %118 = vsyncpa [#allocation3], 1

</llo_original>
